<compile_context>
chip_gen: v5e
topology: v5e:2x2
jax: 0.10.0
libtpu: 0.0.40
codegen_flags: <defaults>
</compile_context>

<pallas_src>
import functools
import math

import jax
import jax.numpy as jnp
from jax.experimental import pallas as pl
from jax.experimental.pallas import tpu as pltpu


def _round_up(x, m):
    return ((x + m - 1) // m) * m


def _layer1_ln_relu(x, w1_ref, b1_ref, g_ref, be_ref, eps):
    # layer1: native-dtype operands on the MXU, f32 accumulation.
    h = jnp.dot(x, w1_ref[...], preferred_element_type=jnp.float32) + b1_ref[...]
    # LayerNorm over the hidden dim — fused stats (one pass: mean + mean of squares).
    mu = jnp.mean(h, axis=-1, keepdims=True)
    ms = jnp.mean(h * h, axis=-1, keepdims=True)
    var = jnp.maximum(ms - mu * mu, 0.0)
    hn = (h - mu) * jax.lax.rsqrt(var + eps)
    hn = hn * g_ref[...] + be_ref[...]
    # ReLU
    return jnp.maximum(hn, 0.0)


def _mlp_kernel_residual(x_ref, w1_ref, b1_ref, g_ref, be_ref,
                         w2h_ref, w2x_ref, b2_ref, o_ref, hn_ref, *, eps):
    # Compute the hidden activation once per row tile; reuse across output tiles.
    @pl.when(pl.program_id(1) == 0)
    def _():
        hn = _layer1_ln_relu(x_ref[...], w1_ref, b1_ref, g_ref, be_ref, eps)
        hn_ref[...] = hn.astype(hn_ref.dtype)

    # layer2 on concat([hn, x], -1)  ==  hn @ W2[:H] + x @ W2[H:] + b2
    out = (jnp.dot(hn_ref[...], w2h_ref[...], preferred_element_type=jnp.float32)
           + jnp.dot(x_ref[...], w2x_ref[...], preferred_element_type=jnp.float32)
           + b2_ref[...])
    o_ref[...] = out.astype(o_ref.dtype)


def _mlp_kernel_plain(x_ref, w1_ref, b1_ref, g_ref, be_ref,
                      w2_ref, b2_ref, o_ref, hn_ref, *, eps):
    @pl.when(pl.program_id(1) == 0)
    def _():
        hn = _layer1_ln_relu(x_ref[...], w1_ref, b1_ref, g_ref, be_ref, eps)
        hn_ref[...] = hn.astype(hn_ref.dtype)

    out = (jnp.dot(hn_ref[...], w2_ref[...], preferred_element_type=jnp.float32)
           + b2_ref[...])
    o_ref[...] = out.astype(o_ref.dtype)


def mlp_pallas(x, params, *, residual, tm=256, tn=512, eps=1e-5,
               vmem_limit_bytes=None):
    """x: [..., Din]. params dict with w1 [Din,H], b1 [H], gamma [H], beta [H],
    w2 [L2, Dout] (L2 = H or H+Din), b2 [Dout]."""
    w1, b1, gamma, beta = params["w1"], params["b1"], params["gamma"], params["beta"]
    w2, b2 = params["w2"], params["b2"]
    din = w1.shape[0]
    hdim = w1.shape[1]
    dout = w2.shape[1]

    lead_shape = x.shape[:-1]
    x2 = x.reshape(-1, din)
    M = x2.shape[0]

    # Lane-dense output: pad output features to a multiple of 128 so the output
    # store is a full-lane vst (not a masked partial store). Sliced off below.
    dout_p = _round_up(dout, 128)
    if dout_p != dout:
        w2 = jnp.pad(w2, ((0, 0), (0, dout_p - dout)))
        b2 = jnp.pad(b2, (0, dout_p - dout))

    # Row tile: as large as possible (multiple of 8), capped at tm.
    tm_eff = min(tm, _round_up(M, 8))
    # Output-feature tile: a multiple of 128 that evenly divides the padded Dout.
    tn_eff = math.gcd(dout_p, max(128, _round_up(tn, 128)))

    grid = (pl.cdiv(M, tm_eff), dout_p // tn_eff)

    # Pre-cast the per-feature vectors to f32 rows once in the wrapper so the
    # kernel epilogue never re-casts them per grid step.
    b1r = b1.astype(jnp.float32).reshape(1, hdim)
    gr = gamma.astype(jnp.float32).reshape(1, hdim)
    ber = beta.astype(jnp.float32).reshape(1, hdim)
    b2r = b2.astype(jnp.float32).reshape(1, dout_p)

    x_spec = pl.BlockSpec((tm_eff, din), lambda i, j: (i, 0))
    out_spec = pl.BlockSpec((tm_eff, tn_eff), lambda i, j: (i, j))
    w1_spec = pl.BlockSpec((din, hdim), lambda i, j: (0, 0))
    hrow_spec = pl.BlockSpec((1, hdim), lambda i, j: (0, 0))
    b2_spec = pl.BlockSpec((1, tn_eff), lambda i, j: (0, j))

    # Hidden activation scratch (reused across the j axis), stored in the layer-2
    # weight dtype so the second matmul operands need no per-step cast.
    hn_scratch = pltpu.VMEM((tm_eff, hdim), w2.dtype)

    if residual:
        w2h = w2[:hdim, :]
        w2x = w2[hdim:, :]
        kernel = functools.partial(_mlp_kernel_residual, eps=eps)
        in_specs = [x_spec, w1_spec, hrow_spec, hrow_spec, hrow_spec,
                    pl.BlockSpec((hdim, tn_eff), lambda i, j: (0, j)),
                    pl.BlockSpec((din, tn_eff), lambda i, j: (0, j)),
                    b2_spec]
        args = (x2, w1, b1r, gr, ber, w2h, w2x, b2r)
    else:
        kernel = functools.partial(_mlp_kernel_plain, eps=eps)
        in_specs = [x_spec, w1_spec, hrow_spec, hrow_spec, hrow_spec,
                    pl.BlockSpec((hdim, tn_eff), lambda i, j: (0, j)),
                    b2_spec]
        args = (x2, w1, b1r, gr, ber, w2, b2r)

    cp_kwargs = dict(dimension_semantics=("parallel", "arbitrary"))
    if vmem_limit_bytes is not None:
        cp_kwargs["vmem_limit_bytes"] = vmem_limit_bytes

    out = pl.pallas_call(
        kernel,
        out_shape=jax.ShapeDtypeStruct((M, dout_p), x.dtype),
        grid_spec=pltpu.PrefetchScalarGridSpec(
            num_scalar_prefetch=0,
            grid=grid,
            in_specs=in_specs,
            out_specs=out_spec,
            scratch_shapes=[hn_scratch],
        ),
        compiler_params=pltpu.CompilerParams(**cp_kwargs),
    )(*args)

    if dout_p != dout:
        out = out[:, :dout]
    return out.reshape(*lead_shape, dout)


def mlp_reference(x, params, *, residual, eps=1e-5):
    h = x @ params["w1"] + params["b1"]
    mu = jnp.mean(h, axis=-1, keepdims=True)
    var = jnp.mean((h - mu) ** 2, axis=-1, keepdims=True)
    h = (h - mu) / jnp.sqrt(var + eps) * params["gamma"] + params["beta"]
    h = jnp.maximum(h, 0.0)
    if residual:
        h = jnp.concatenate([h, x], axis=-1)
    return h @ params["w2"] + params["b2"]


def init_params(key, input_dim, output_dim, hidden_dim, residual):
    layer2_dim = hidden_dim + input_dim if residual else hidden_dim
    k1, k2, k3, k4 = jax.random.split(key, 4)
    # deterministic synthetic init (PyTorch-style uniform fan-in scaling)
    s1 = 1.0 / jnp.sqrt(input_dim)
    s2 = 1.0 / jnp.sqrt(layer2_dim)
    return {
        "w1": jax.random.uniform(k1, (input_dim, hidden_dim), jnp.float32, -s1, s1),
        "b1": jax.random.uniform(k2, (hidden_dim,), jnp.float32, -s1, s1),
        "gamma": jnp.ones((hidden_dim,), jnp.float32),
        "beta": jnp.zeros((hidden_dim,), jnp.float32),
        "w2": jax.random.uniform(k3, (layer2_dim, output_dim), jnp.float32, -s2, s2),
        "b2": jax.random.uniform(k4, (output_dim,), jnp.float32, -s2, s2),
    }


if __name__ == "__main__":
    key = jax.random.PRNGKey(0)
    batch, seq = 2, 8
    input_dim, hidden_dim, output_dim = 32, 32, 32
    M = batch * seq

    kx, kp = jax.random.split(key)
    x = jax.random.normal(kx, (M, input_dim), jnp.float32)

    # f32 correctness check against pure-JAX reference, both variants.
    for residual in (False, True):
        params = init_params(kp, input_dim, output_dim, hidden_dim, residual)
        out = jax.block_until_ready(mlp_pallas(x, params, residual=residual))
        ref = mlp_reference(x, params, residual=residual)
        assert out.shape == (M, output_dim)
        assert jnp.allclose(out, ref, atol=1e-4, rtol=1e-4), (
            f"mismatch (residual={residual}): "
            f"{float(jnp.max(jnp.abs(out - ref)))}")

    # Non-128-aligned output dim + multiple output-feature tiles (exercises the
    # pad-and-slice path and the scratch reuse across the j axis).
    params2 = init_params(kp, 200, 200, hidden_dim, True)
    params2 = {**params2,
               "w1": params2["w1"][:input_dim, :],
               "w2": params2["w2"][:hidden_dim + input_dim, :]}
    out2 = jax.block_until_ready(
        mlp_pallas(x, params2, residual=True, tn=128))
    ref2 = mlp_reference(x, params2, residual=True)
    assert out2.shape == (M, 200)
    assert jnp.allclose(out2, ref2, atol=1e-4, rtol=1e-4), (
        f"mismatch (padded dout): {float(jnp.max(jnp.abs(out2 - ref2)))}")

    # bf16 sanity run: matmuls execute in bf16 on the MXU with f32 accumulation.
    params = init_params(kp, input_dim, output_dim, hidden_dim, True)
    params_bf16 = {k: (v.astype(jnp.bfloat16) if k in ("w1", "w2") else v)
                   for k, v in params.items()}
    out_bf16 = jax.block_until_ready(
        mlp_pallas(x.astype(jnp.bfloat16), params_bf16, residual=True))
    assert out_bf16.shape == (M, output_dim)
    assert bool(jnp.all(jnp.isfinite(out_bf16.astype(jnp.float32))))

    print("KERNEL_OK")
</pallas_src>

<mosaic_0001>
module attributes {stable_mosaic.version = 11 : i64} {
  func.func @_mlp_kernel_plain(%arg0: i32, %arg1: i32, %arg2: memref<16x32xf32, #tpu.memory_space<vmem>>, %arg3: memref<32x32xf32, #tpu.memory_space<vmem>>, %arg4: memref<1x32xf32, #tpu.memory_space<vmem>>, %arg5: memref<1x32xf32, #tpu.memory_space<vmem>>, %arg6: memref<1x32xf32, #tpu.memory_space<vmem>>, %arg7: memref<32x128xf32, #tpu.memory_space<vmem>>, %arg8: memref<1x128xf32, #tpu.memory_space<vmem>>, %arg9: memref<16x128xf32, #tpu.memory_space<vmem>>, %arg10: memref<16x32xf32, #tpu.memory_space<vmem>>) attributes {dimension_semantics = [#tpu.dimension_semantics<parallel>, #tpu.dimension_semantics<arbitrary>], iteration_bounds = array<i64: 1, 1>, scalar_prefetch = 0 : i64, scratch_operands = 1 : i64, tpu.core_type = #tpu.core_type<tc>, window_params = [{transform_indices = @transform_0, window_bounds = array<i64: 16, 32>}, {pipeline_mode = #tpu.pipeline_mode<synchronous>, transform_indices = @transform_1, window_bounds = array<i64: 32, 32>}, {pipeline_mode = #tpu.pipeline_mode<synchronous>, transform_indices = @transform_2, window_bounds = array<i64: 1, 32>}, {pipeline_mode = #tpu.pipeline_mode<synchronous>, transform_indices = @transform_3, window_bounds = array<i64: 1, 32>}, {pipeline_mode = #tpu.pipeline_mode<synchronous>, transform_indices = @transform_4, window_bounds = array<i64: 1, 32>}, {transform_indices = @transform_5, window_bounds = array<i64: 32, 128>}, {transform_indices = @transform_6, window_bounds = array<i64: 1, 128>}, {transform_indices = @transform_7, window_bounds = array<i64: 16, 128>}]} {
    %c0_i32 = arith.constant 0 : i32
    %0 = arith.cmpi eq, %arg1, %c0_i32 : i32
    %1 = arith.extui %0 : i1 to i32
    %c0_i32_0 = arith.constant 0 : i32
    %2 = arith.cmpi ne, %1, %c0_i32_0 : i32
    scf.if %2 {
      %c0_8 = arith.constant 0 : index
      %c0_9 = arith.constant 0 : index
      %10 = vector.load %arg2[%c0_8, %c0_9] : memref<16x32xf32, #tpu.memory_space<vmem>>, vector<16x32xf32>
      %c0_10 = arith.constant 0 : index
      %c0_11 = arith.constant 0 : index
      %11 = vector.load %arg3[%c0_10, %c0_11] : memref<32x32xf32, #tpu.memory_space<vmem>>, vector<32x32xf32>
      %cst_12 = arith.constant dense<0.000000e+00> : vector<16x32xf32>
      %12 = tpu.matmul %10, %11, %cst_12 {dimension_numbers = #tpu.dot_dimension_numbers<[1], [0], [0], [1], [0, 0, 1, 1], [], []>} : vector<16x32xf32>, vector<32x32xf32>, vector<16x32xf32> -> vector<16x32xf32>
      %c0_13 = arith.constant 0 : index
      %c0_14 = arith.constant 0 : index
      %13 = vector.load %arg4[%c0_13, %c0_14] : memref<1x32xf32, #tpu.memory_space<vmem>>, vector<1x32xf32>
      %14 = vector.broadcast %13 : vector<1x32xf32> to vector<16x32xf32>
      %15 = arith.addf %12, %14 : vector<16x32xf32>
      %cst_15 = arith.constant dense<0.000000e+00> : vector<16xf32>
      %16 = vector.multi_reduction <add>, %15, %cst_15 [1] : vector<16x32xf32> to vector<16xf32>
      %17 = vector.shape_cast %16 : vector<16xf32> to vector<16x1xf32>
      %cst_16 = arith.constant 3.200000e+01 : f32
      %18 = vector.broadcast %cst_16 : f32 to vector<16x1xf32>
      %19 = arith.divf %17, %18 : vector<16x1xf32>
      %20 = arith.mulf %15, %15 : vector<16x32xf32>
      %cst_17 = arith.constant dense<0.000000e+00> : vector<16xf32>
      %21 = vector.multi_reduction <add>, %20, %cst_17 [1] : vector<16x32xf32> to vector<16xf32>
      %22 = vector.shape_cast %21 : vector<16xf32> to vector<16x1xf32>
      %cst_18 = arith.constant 3.200000e+01 : f32
      %23 = vector.broadcast %cst_18 : f32 to vector<16x1xf32>
      %24 = arith.divf %22, %23 : vector<16x1xf32>
      %25 = arith.mulf %19, %19 : vector<16x1xf32>
      %26 = arith.subf %24, %25 : vector<16x1xf32>
      %cst_19 = arith.constant 0.000000e+00 : f32
      %27 = vector.broadcast %cst_19 : f32 to vector<16x1xf32>
      %28 = arith.maximumf %26, %27 : vector<16x1xf32>
      %29 = vector.broadcast %19 : vector<16x1xf32> to vector<16x32xf32>
      %30 = arith.subf %15, %29 : vector<16x32xf32>
      %cst_20 = arith.constant 9.99999974E-6 : f32
      %31 = vector.broadcast %cst_20 : f32 to vector<16x1xf32>
      %32 = arith.addf %28, %31 : vector<16x1xf32>
      %33 = math.rsqrt %32 : vector<16x1xf32>
      %34 = vector.broadcast %33 : vector<16x1xf32> to vector<16x32xf32>
      %35 = arith.mulf %30, %34 : vector<16x32xf32>
      %c0_21 = arith.constant 0 : index
      %c0_22 = arith.constant 0 : index
      %36 = vector.load %arg5[%c0_21, %c0_22] : memref<1x32xf32, #tpu.memory_space<vmem>>, vector<1x32xf32>
      %37 = vector.broadcast %36 : vector<1x32xf32> to vector<16x32xf32>
      %38 = arith.mulf %35, %37 : vector<16x32xf32>
      %c0_23 = arith.constant 0 : index
      %c0_24 = arith.constant 0 : index
      %39 = vector.load %arg6[%c0_23, %c0_24] : memref<1x32xf32, #tpu.memory_space<vmem>>, vector<1x32xf32>
      %40 = vector.broadcast %39 : vector<1x32xf32> to vector<16x32xf32>
      %41 = arith.addf %38, %40 : vector<16x32xf32>
      %cst_25 = arith.constant 0.000000e+00 : f32
      %42 = vector.broadcast %cst_25 : f32 to vector<16x32xf32>
      %43 = arith.maximumf %41, %42 : vector<16x32xf32>
      %c0_26 = arith.constant 0 : index
      %c0_27 = arith.constant 0 : index
      %44 = vector.load %arg10[%c0_26, %c0_27] : memref<16x32xf32, #tpu.memory_space<vmem>>, vector<16x32xf32>
      tpu.vector_store %arg10[%c0_26, %c0_27], %43 {strides = array<i32>} : memref<16x32xf32, #tpu.memory_space<vmem>>, vector<16x32xf32>,
    } else {
    }
    %c0 = arith.constant 0 : index
    %c0_1 = arith.constant 0 : index
    %3 = vector.load %arg10[%c0, %c0_1] : memref<16x32xf32, #tpu.memory_space<vmem>>, vector<16x32xf32>
    %c0_2 = arith.constant 0 : index
    %c0_3 = arith.constant 0 : index
    %4 = vector.load %arg7[%c0_2, %c0_3] : memref<32x128xf32, #tpu.memory_space<vmem>>, vector<32x128xf32>
    %cst = arith.constant dense<0.000000e+00> : vector<16x128xf32>
    %5 = tpu.matmul %3, %4, %cst {dimension_numbers = #tpu.dot_dimension_numbers<[1], [0], [0], [1], [0, 0, 1, 1], [], []>} : vector<16x32xf32>, vector<32x128xf32>, vector<16x128xf32> -> vector<16x128xf32>
    %c0_4 = arith.constant 0 : index
    %c0_5 = arith.constant 0 : index
    %6 = vector.load %arg8[%c0_4, %c0_5] : memref<1x128xf32, #tpu.memory_space<vmem>>, vector<1x128xf32>
    %7 = vector.broadcast %6 : vector<1x128xf32> to vector<16x128xf32>
    %8 = arith.addf %5, %7 : vector<16x128xf32>
    %c0_6 = arith.constant 0 : index
    %c0_7 = arith.constant 0 : index
    %9 = vector.load %arg9[%c0_6, %c0_7] : memref<16x128xf32, #tpu.memory_space<vmem>>, vector<16x128xf32>
    tpu.vector_store %arg9[%c0_6, %c0_7], %8 {strides = array<i32>} : memref<16x128xf32, #tpu.memory_space<vmem>>, vector<16x128xf32>,
    return
  }
  func.func @transform_0(%arg0: i32, %arg1: i32) -> (i32, i32) {
    %c0_i32 = arith.constant 0 : i32
    %c0_i32_0 = arith.constant 0 : i32
    return %arg0, %c0_i32 : i32, i32
  }
  func.func @transform_1(%arg0: i32, %arg1: i32) -> (i32, i32) {
    %c0_i32 = arith.constant 0 : i32
    %c0_i32_0 = arith.constant 0 : i32
    %c0_i32_1 = arith.constant 0 : i32
    return %c0_i32, %c0_i32_0 : i32, i32
  }
  func.func @transform_2(%arg0: i32, %arg1: i32) -> (i32, i32) {
    %c0_i32 = arith.constant 0 : i32
    %c0_i32_0 = arith.constant 0 : i32
    %c0_i32_1 = arith.constant 0 : i32
    return %c0_i32, %c0_i32_0 : i32, i32
  }
  func.func @transform_3(%arg0: i32, %arg1: i32) -> (i32, i32) {
    %c0_i32 = arith.constant 0 : i32
    %c0_i32_0 = arith.constant 0 : i32
    %c0_i32_1 = arith.constant 0 : i32
    return %c0_i32, %c0_i32_0 : i32, i32
  }
  func.func @transform_4(%arg0: i32, %arg1: i32) -> (i32, i32) {
    %c0_i32 = arith.constant 0 : i32
    %c0_i32_0 = arith.constant 0 : i32
    %c0_i32_1 = arith.constant 0 : i32
    return %c0_i32, %c0_i32_0 : i32, i32
  }
  func.func @transform_5(%arg0: i32, %arg1: i32) -> (i32, i32) {
    %c0_i32 = arith.constant 0 : i32
    %c0_i32_0 = arith.constant 0 : i32
    return %c0_i32, %arg1 : i32, i32
  }
  func.func @transform_6(%arg0: i32, %arg1: i32) -> (i32, i32) {
    %c0_i32 = arith.constant 0 : i32
    %c0_i32_0 = arith.constant 0 : i32
    return %c0_i32, %arg1 : i32, i32
  }
  func.func @transform_7(%arg0: i32, %arg1: i32) -> (i32, i32) {
    %c0_i32 = arith.constant 0 : i32
    return %arg0, %arg1 : i32, i32
  }
}

</mosaic_0001>

<llo_original>
// kernel: tpu_custom_call.1
$region0: #{tpu_custom_call.1}
  #allocation0 [shape = 'u32[]', space=smem, size = 0x4, offset = 0x4, fixed_abs, tag = 'smem constant byte address 0x4 - core index']
  #allocation1 [shape = 'u32[72,128]{1,0:T(1,128)}', space=vmem, size = 0x9000, scoped, tag = 'internal scratch']
  #allocation2 [shape = 'f32[16,32]{1,0:T(8,128)}', space=vmem, size = 0x2000, scoped, tag = 'scratch operand']
  %s0 = inlined_call_operand.hbm [shape: f32[16,32], index: 0, kind: input, shape index: {}]
  %s1 = inlined_call_operand.hbm [shape: f32[32,32], index: 1, kind: input, shape index: {}]
  %s2 = inlined_call_operand.vmem [shape: f32[1,32], index: 2, kind: input, shape index: {}]
  %s3 = inlined_call_operand.vmem [shape: f32[1,32], index: 3, kind: input, shape index: {}]
  %s4 = inlined_call_operand.vmem [shape: f32[1,32], index: 4, kind: input, shape index: {}]
  %s5 = inlined_call_operand.hbm [shape: f32[32,128], index: 5, kind: input, shape index: {}]
  %s6 = inlined_call_operand.vmem [shape: f32[1,128], index: 6, kind: input, shape index: {}]
  %s7 = inlined_call_operand.hbm [shape: f32[16,128], index: 7, kind: output, shape index: {}]
  %s8 = sld [smem:[#allocation0]]
  $region54: #{tpu_custom_call.1} parent=0
    _
  %s10 = ssub.s32 1, %s8
  %s11 = scalar_select 0, %s10, %s8
  $region1: #{tpu_custom_call.1} parent=0
    #allocation3 [shape = 'u8[8192]{0}', space=vmem, size = 0x2000, scoped, tag = 'input window, operand 0, single buffered']
    #allocation4 [shape = 's32[1]{0}', space=sflag, size = 0x4, scoped, tag = 'scoped memory for tpu_custom_call.1']
    #allocation5 [shape = 's32[1]{0}', space=sflag, size = 0x4, scoped, tag = 'scoped memory for tpu_custom_call.1']
    #allocation6 [shape = 'u8[16384]{0}', space=vmem, size = 0x4000, scoped, tag = 'input window, operand 1, single buffered']
    #allocation7 [shape = 's32[1]{0}', space=sflag, size = 0x4, scoped, tag = 'scoped memory for tpu_custom_call.1']
    #allocation8 [shape = 'u8[16384]{0}', space=vmem, size = 0x4000, scoped, tag = 'input window, operand 5, single buffered']
    #allocation9 [shape = 'u8[8192]{0}', space=vmem, size = 0x2000, scoped, tag = 'output window, operand 0, single buffered']
    %12 = vsyncpa [#allocation4], 0
    %13 = vsyncpa [#allocation7], 0
    %14 = vsyncpa [#allocation5], 0
    // Predicated region
    $region2: #{tpu_custom_call.1} parent=1 // pred_check
      _
    $region3: #{tpu_custom_call.1} parent=1 // pred_check_branch
      %16 = sbr.rel (0) target = $region5
    $region4: #{tpu_custom_call.1} parent=1 // pred_region
      %18 = vsyncadd [#allocation4], 0
      %s19 = sshll.u32 %s0, 4
      %s20 = int_to_ptr.hbm [resolvable:$true] %s19
      %s21 = sshll.u32 [#allocation3], 4
      %s22 = int_to_ptr.vmem [resolvable:$true] %s21
      %27 = dma.hbm_to_vmem [thread:$0]  %s20, 256, %s22, [#allocation4], 128, 128, 8
    $region5: #{tpu_custom_call.1} parent=1 // pred_fallthru
      _
    // Predicated region
    $region6: #{tpu_custom_call.1} parent=1 // pred_check
      _
    $region7: #{tpu_custom_call.1} parent=1 // pred_check_branch
      %29 = sbr.rel (0) target = $region9
    $region8: #{tpu_custom_call.1} parent=1 // pred_region
      %31 = vsyncadd [#allocation7], 0
      %s32 = sshll.u32 %s1, 4
      %s33 = int_to_ptr.hbm [resolvable:$true] %s32
      %s34 = sshll.u32 [#allocation6], 4
      %s35 = int_to_ptr.vmem [resolvable:$true] %s34
      %40 = dma.hbm_to_vmem [thread:$0]  %s33, 512, %s35, [#allocation7], 128, 128, 8
    $region9: #{tpu_custom_call.1} parent=1 // pred_fallthru
      _
    // Predicated region
    $region10: #{tpu_custom_call.1} parent=1 // pred_check
      _
    $region11: #{tpu_custom_call.1} parent=1 // pred_check_branch
      %42 = sbr.rel (0) target = $region13
    $region12: #{tpu_custom_call.1} parent=1 // pred_region
      _
    $region13: #{tpu_custom_call.1} parent=1 // pred_fallthru
      _
    // Predicated region
    $region14: #{tpu_custom_call.1} parent=1 // pred_check
      _
    $region15: #{tpu_custom_call.1} parent=1 // pred_check_branch
      %44 = sbr.rel (0) target = $region17
    $region16: #{tpu_custom_call.1} parent=1 // pred_region
      _
    $region17: #{tpu_custom_call.1} parent=1 // pred_fallthru
      _
    // Predicated region
    $region18: #{tpu_custom_call.1} parent=1 // pred_check
      _
    $region19: #{tpu_custom_call.1} parent=1 // pred_check_branch
      %46 = sbr.rel (0) target = $region21
    $region20: #{tpu_custom_call.1} parent=1 // pred_region
      _
    $region21: #{tpu_custom_call.1} parent=1 // pred_fallthru
      _
    // Predicated region
    $region22: #{tpu_custom_call.1} parent=1 // pred_check
      _
    $region23: #{tpu_custom_call.1} parent=1 // pred_check_branch
      %48 = sbr.rel (0) target = $region25
    $region24: #{tpu_custom_call.1} parent=1 // pred_region
      %50 = vsyncadd [#allocation7], 0
      %s51 = sshll.u32 %s5, 4
      %s52 = int_to_ptr.hbm [resolvable:$true] %s51
      %s53 = sshll.u32 [#allocation8], 4
      %s54 = int_to_ptr.vmem [resolvable:$true] %s53
      %59 = dma.hbm_to_vmem [thread:$0]  %s52, 512, %s54, [#allocation7], 128, 128, 8
    $region25: #{tpu_custom_call.1} parent=1 // pred_fallthru
      _
    // Predicated region
    $region26: #{tpu_custom_call.1} parent=1 // pred_check
      _
    $region27: #{tpu_custom_call.1} parent=1 // pred_check_branch
      %61 = sbr.rel (0) target = $region29
    $region28: #{tpu_custom_call.1} parent=1 // pred_region
      _
    $region29: #{tpu_custom_call.1} parent=1 // pred_fallthru
      _
    // Predicated region
    $region30: #{tpu_custom_call.1} parent=1 // pred_check
      _
    $region31: #{tpu_custom_call.1} parent=1 // pred_check_branch
      %63 = sbr.rel (0) target = $region33
    $region32: #{tpu_custom_call.1} parent=1 // pred_region
      %65 = dma.done [#allocation4], 256
    $region33: #{tpu_custom_call.1} parent=1 // pred_fallthru
      _
    // Predicated region
    $region34: #{tpu_custom_call.1} parent=1 // pred_check
      _
    $region35: #{tpu_custom_call.1} parent=1 // pred_check_branch
      %67 = sbr.rel (0) target = $region37
    $region36: #{tpu_custom_call.1} parent=1 // pred_region
      %69 = dma.done [#allocation7], 512
    $region37: #{tpu_custom_call.1} parent=1 // pred_fallthru
      _
    // Predicated region
    $region38: #{tpu_custom_call.1} parent=1 // pred_check
      _
    $region39: #{tpu_custom_call.1} parent=1 // pred_check_branch
      %71 = sbr.rel (0) target = $region41
    $region40: #{tpu_custom_call.1} parent=1 // pred_region
      %73 = dma.done [#allocation7], 512
    $region41: #{tpu_custom_call.1} parent=1 // pred_fallthru
      _
    %p74 = scmp.eq.s32.totalorder 0, 0
    // Predicated region
    $region42: #{tpu_custom_call.1} parent=1 // pred_check
      %p75 = pneg %p74
    $region43: #{tpu_custom_call.1} parent=1 // pred_check_branch
      %77 = sbr.rel (%p75) target = $region45
    $region44: #{tpu_custom_call.1} parent=1 // pred_region
      %v78 = vld [vmem:[#allocation3] sm:$0xff]
      %v79 = vld [vmem:[#allocation3 + $0x8] sm:$0xff]
      %v80 = vld [vmem:[#allocation6] sm:$0xff]
      %v81 = vld [vmem:[#allocation6 + $0x8] sm:$0xff]
      %v82 = vld [vmem:[#allocation6 + $0x10] sm:$0xff]
      %v83 = vld [vmem:[#allocation6 + $0x18] sm:$0xff]
      %v84 = vld [vmem:[%s2] sm:$0x1]
      %v86 = vperm.slane %v84, 0
      %vm88 = vcmask 261120
      %v90 = vsel %vm88, %v78, 0
      %v93 = vsel %vm88, %v79, 0
      %95 = vmatpush.msra.mxu0 0.0
      %96 = vmatpush.msra.mxu0 0.0
      %97 = vmatpush.msra.mxu0 0.0
      %98 = vmatpush.msra.mxu0 0.0
      %99 = vmatpush.msra.mxu0 0.0
      %100 = vmatpush.msra.mxu0 0.0
      %101 = vmatpush.msra.mxu0 0.0
      %102 = vmatpush.msra.mxu0 0.0
      %103 = vmatpush.msra.mxu0 0.0
      %104 = vmatpush.msra.mxu0 0.0
      %105 = vmatpush.msra.mxu0 0.0
      %106 = vmatpush.msra.mxu0 0.0
      %107 = vmatpush.msra.mxu0 %v83
      %108 = vmatpush.msra.mxu0 %v82
      %109 = vmatpush.msra.mxu0 %v81
      %110 = vmatpush.msra.mxu0 %v80
      %111 = vmatmul.f32.gmra.mxu0 %v90
      %v112 = vpop.f32.mrf.mxu0
      %v113 = vadd.f32 %v86, %v112
      %114 = vmatmul.f32.gmra.mxu0 %v93
      %v115 = vpop.f32.mrf.mxu0
      %v116 = vadd.f32 %v86, %v115
      %117 = vdwg.mxu0
      %v118 = vsel %vm88, %v113, 0.0
      %119 = vadd.xlane.f32.xlu0 %v118
      %v120 = vpop.xlane.xlu0 %119
      %v121 = vsel %vm88, %v116, 0.0
      %122 = vadd.xlane.f32.xlu0 %v121
      %v123 = vpop.xlane.xlu0 %122
      %v124 = vrcp.pop 32.0
      %v125 = vmul.f32 32.0, %v124
      %v126 = vsub.f32 1.0, %v125
      %v127 = vmul.f32 %v124, %v126
      %v128 = vadd.f32 %v124, %v127
      %vm129 = vweird.f32 %v124
      %v130 = vsel %vm129, %v124, %v128
      %v131 = vmul.f32 %v120, %v130
      %v132 = vmul.f32 %v123, %v130
      %v133 = vmul.f32 %v113, %v113
      %v134 = vmul.f32 %v116, %v116
      %v135 = vsel %vm88, %v133, 0.0
      %136 = vadd.xlane.f32.xlu0 %v135
      %v137 = vpop.xlane.xlu0 %136
      %v138 = vsel %vm88, %v134, 0.0
      %139 = vadd.xlane.f32.xlu0 %v138
      %v140 = vpop.xlane.xlu0 %139
      %v141 = vmul.f32 %v137, %v130
      %v142 = vmul.f32 %v140, %v130
      %v143 = vmul.f32 %v131, %v131
      %v144 = vmul.f32 %v132, %v132
      %v145 = vsub.f32 %v141, %v143
      %v146 = vsub.f32 %v142, %v144
      %v147 = vmax.f32 %v145, 0.0
      %v148 = vmax.f32 %v146, 0.0
      %v149 = vsub.f32 %v113, %v131
      %v150 = vsub.f32 %v116, %v132
      %v151 = vadd.f32 %v147, 1e-05
      %v152 = vadd.f32 %v148, 1e-05
      %v153 = vrsqrt.pop %v151
      %v154 = vmul.f32 %v153, %v151
      %v155 = vmul.f32 %v154, %v153
      %v156 = vmul.f32 0.5, %v155
      %v157 = vsub.f32 1.5, %v156
      %v158 = vmul.f32 %v153, %v157
      %vm159 = vweird.f32 %v151
      %vm160 = vweird.f32 %v153
      %vm161 = vmor %vm159, %vm160
      %v162 = vsel %vm161, %v153, %v158
      %v163 = vrsqrt.pop %v152
      %v164 = vmul.f32 %v163, %v152
      %v165 = vmul.f32 %v164, %v163
      %v166 = vmul.f32 0.5, %v165
      %v167 = vsub.f32 1.5, %v166
      %v168 = vmul.f32 %v163, %v167
      %vm169 = vweird.f32 %v152
      %vm170 = vweird.f32 %v163
      %vm171 = vmor %vm169, %vm170
      %v172 = vsel %vm171, %v163, %v168
      %v173 = vmul.f32 %v149, %v162
      %v174 = vmul.f32 %v150, %v172
      %v175 = vld [vmem:[%s3] sm:$0x1]
      %v177 = vperm.slane %v175, 0
      %v179 = vmul.f32 %v173, %v177
      %v180 = vmul.f32 %v174, %v177
      %v181 = vld [vmem:[%s4] sm:$0x1]
      %v183 = vperm.slane %v181, 0
      %v185 = vadd.f32 %v179, %v183
      %v186 = vadd.f32 %v180, %v183
      %v187 = vmax.f32 %v185, 0.0
      %v188 = vmax.f32 %v186, 0.0
      %189 = vst.msk [vmem:[#allocation2] sm:$0xff] %vm88, %v187
      %190 = vst.msk [vmem:[#allocation2 + $0x8] sm:$0xff] %vm88, %v188
    $region45: #{tpu_custom_call.1} parent=1 // pred_fallthru
      _
    %v191 = vld [vmem:[#allocation2] sm:$0xff]
    %v192 = vld [vmem:[#allocation2 + $0x8] sm:$0xff]
    %v193 = vld [vmem:[#allocation8] sm:$0xff]
    %v194 = vld [vmem:[#allocation8 + $0x8] sm:$0xff]
    %v195 = vld [vmem:[#allocation8 + $0x10] sm:$0xff]
    %v196 = vld [vmem:[#allocation8 + $0x18] sm:$0xff]
    %v197 = vld [vmem:[%s6] sm:$0x1]
    %v199 = vperm.slane %v197, 0
    %vm201 = vcmask 261120
    %v203 = vsel %vm201, %v191, 0
    %v206 = vsel %vm201, %v192, 0
    %208 = vmatpush.msra.mxu0 0.0
    %209 = vmatpush.msra.mxu0 0.0
    %210 = vmatpush.msra.mxu0 0.0
    %211 = vmatpush.msra.mxu0 0.0
    %212 = vmatpush.msra.mxu0 0.0
    %213 = vmatpush.msra.mxu0 0.0
    %214 = vmatpush.msra.mxu0 0.0
    %215 = vmatpush.msra.mxu0 0.0
    %216 = vmatpush.msra.mxu0 0.0
    %217 = vmatpush.msra.mxu0 0.0
    %218 = vmatpush.msra.mxu0 0.0
    %219 = vmatpush.msra.mxu0 0.0
    %220 = vmatpush.msra.mxu0 %v196
    %221 = vmatpush.msra.mxu0 %v195
    %222 = vmatpush.msra.mxu0 %v194
    %223 = vmatpush.msra.mxu0 %v193
    %224 = vmatmul.f32.gmra.mxu0 %v203
    %v225 = vpop.f32.mrf.mxu0
    %v226 = vadd.f32 %v199, %v225
    %227 = vmatmul.f32.gmra.mxu0 %v206
    %v228 = vpop.f32.mrf.mxu0
    %v229 = vadd.f32 %v199, %v228
    %230 = vdwg.mxu0
    %231 = vst [vmem:[#allocation9] sm:$0xff] %v226
    %232 = vst [vmem:[#allocation9 + $0x8] sm:$0xff] %v229
    // Predicated region
    $region46: #{tpu_custom_call.1} parent=1 // pred_check
      _
    $region47: #{tpu_custom_call.1} parent=1 // pred_check_branch
      %234 = sbr.rel (0) target = $region49
    $region48: #{tpu_custom_call.1} parent=1 // pred_region
      %236 = vsyncadd [#allocation5], 0
      %s237 = sshll.u32 [#allocation9], 4
      %s238 = int_to_ptr.vmem [resolvable:$true] %s237
      %s239 = sshll.u32 %s7, 4
      %s240 = int_to_ptr.hbm [resolvable:$true] %s239
      %245 = dma.vmem_to_hbm [thread:$0]  %s238, 256, %s240, [#allocation5], 128, 128, 8
    $region49: #{tpu_custom_call.1} parent=1 // pred_fallthru
      _
    // Predicated region
    $region50: #{tpu_custom_call.1} parent=1 // pred_check
      _
    $region51: #{tpu_custom_call.1} parent=1 // pred_check_branch
      %247 = sbr.rel (0) target = $region53
    $region52: #{tpu_custom_call.1} parent=1 // pred_region
      %249 = dma.done [#allocation5], 256
    $region53: #{tpu_custom_call.1} parent=1 // pred_fallthru
      _
    %250 = vsyncpa [#allocation4], 1
    %251 = vsyncpa [#allocation7], 1
    %252 = vsyncpa [#allocation5], 1

</llo_original>
